<compile_context>
chip_gen: v7x
topology: tpu7x:2x2x1
jax: 0.10.0
libtpu: 0.0.40
codegen_flags: <defaults>
</compile_context>

<pallas_src>
import functools

import jax
import jax.numpy as jnp
from jax.experimental import pallas as pl
from jax.experimental.pallas import tpu as pltpu


def _round_up(a: int, b: int) -> int:
    return (a + b - 1) // b * b


def _cdiv(a: int, b: int) -> int:
    return -(-a // b)


# --------------------------------------------------------------------------- #
# Kernels
# --------------------------------------------------------------------------- #
def _query_dot_kernel(x_ref, w_ref, o_ref):
    # x_ref: (tm, K)      streamed tile
    # w_ref: (K, n_pad)   resident weight (already W.T, canonical MXU layout)
    # o_ref: (tm, n_pad)  lane-dense output tile
    o_ref[...] = jnp.dot(
        x_ref[...], w_ref[...], preferred_element_type=jnp.float32
    ).astype(o_ref.dtype)


def _query_dot_acc_kernel(x_ref, w_ref, o_ref, acc_ref):
    # Tiled fallback for large weights: grid = (M, N, K-reduction).
    @pl.when(pl.program_id(2) == 0)
    def _init():
        acc_ref[...] = jnp.zeros_like(acc_ref)

    acc_ref[...] += jnp.dot(
        x_ref[...], w_ref[...], preferred_element_type=jnp.float32
    )

    @pl.when(pl.program_id(2) == pl.num_programs(2) - 1)
    def _finalize():
        o_ref[...] = acc_ref[...].astype(o_ref.dtype)


# --------------------------------------------------------------------------- #
# Generation-aware sizing
# --------------------------------------------------------------------------- #
def _tpu_generation_info():
    """Returns (vmem_budget, tm_max, vmem_limit_cap, want_two_m_tiles)."""
    vmem_cap = None
    try:
        vmem_cap = int(pltpu.get_tpu_info().vmem_capacity_bytes)
    except Exception:
        vmem_cap = None
    if vmem_cap is None:
        try:
            kind = jax.devices()[0].device_kind.lower()
            if "v5" in kind or "v6" in kind:
                vmem_cap = 128 * 1024 * 1024
        except Exception:
            pass
    if vmem_cap is not None and vmem_cap >= 100 * 1024 * 1024:
        # v5e / v6e class parts: 128 MiB VMEM per core, single TC.
        return 80 * 1024 * 1024, 1024, 100 * 1024 * 1024, False
    # v7x (64 MiB / TC, 2 TCs) or unknown: conservative budget, feed both TCs.
    return 28 * 1024 * 1024, 512, 48 * 1024 * 1024, True


# --------------------------------------------------------------------------- #
# Wrapper
# --------------------------------------------------------------------------- #
def query_forward(x, weight, *, force_tiled: bool = False,
                  tn_target: int = 512, tk_target: int = 512):
    """Pallas equivalent of Query.forward: x @ W.T (no bias).

    Args:
      x:      [..., dim_input]
      weight: [dim_attn, dim_input]  (PyTorch nn.Linear convention)
    Returns:
      [..., dim_attn], same dtype as x.
    """
    dim_attn, dim_input = weight.shape
    assert x.shape[-1] == dim_input
    lead_shape = x.shape[:-1]
    m = 1
    for d in lead_shape:
        m *= d

    dtype = x.dtype
    itemsize = jnp.dtype(dtype).itemsize
    # Sublane packing: 8 rows (f32), 16 (bf16), 32 (int8/fp8).
    align = max(8, 32 // itemsize)

    vmem_budget, tm_max, vmem_cap, want_two_m_tiles = _tpu_generation_info()

    n_pad = _round_up(dim_attn, 128)          # lane-dense output width
    k_lane = _round_up(dim_input, 128)        # VMEM lane footprint of x's K
    k_sub = _round_up(dim_input, align)       # VMEM sublane footprint of w's K

    x2d = x.reshape(m, dim_input)             # no copy, no padding of x here
    w_t = weight.T                            # one-time [K, N] host transpose

    flops = 2 * m * dim_input * n_pad
    bytes_accessed = (m * dim_input + dim_input * n_pad + m * n_pad) * itemsize
    cost = pl.CostEstimate(flops=flops, transcendentals=0,
                           bytes_accessed=bytes_accessed)

    resident_w_bytes = 2 * k_sub * n_pad * itemsize   # pipeline double-buffers it
    use_resident = (not force_tiled) and (resident_w_bytes <= vmem_budget // 2)

    if use_resident:
        # -------- Resident-weight path: 1-D grid over M, weight stays in VMEM.
        if n_pad != dim_attn:
            w_t = jnp.pad(w_t, ((0, 0), (0, n_pad - dim_attn)))

        per_row = 2 * (k_lane + n_pad) * itemsize      # x tile + out tile rows (dbl-buf)
        tm_cap = max(align,
                     ((vmem_budget - resident_w_bytes) // per_row) // align * align)
        tm_eff_max = min(tm_max, tm_cap)
        n_tiles = _cdiv(m, max(align, tm_eff_max))
        if want_two_m_tiles and m > align:
            n_tiles = max(n_tiles, 2)                  # keep both v7x TCs busy
        tm = min(_round_up(_cdiv(m, n_tiles), align),
                 _round_up(tm_eff_max, align))
        tm = max(align, tm)
        grid_m = _cdiv(m, tm)

        vmem_needed = resident_w_bytes + tm * per_row
        vmem_limit = int(min(max(vmem_needed * 3 // 2, 16 * 1024 * 1024), vmem_cap))

        out2d = pl.pallas_call(
            _query_dot_kernel,
            out_shape=jax.ShapeDtypeStruct((m, n_pad), dtype),
            grid_spec=pltpu.PrefetchScalarGridSpec(
                num_scalar_prefetch=0,
                grid=(grid_m,),
                in_specs=[
                    # x: K block extent == full array dim -> no host-side K pad.
                    pl.BlockSpec((tm, dim_input), lambda i: (i, 0)),
                    # weight [K, n_pad]: constant index -> fetched once, resident.
                    pl.BlockSpec((dim_input, n_pad), lambda i: (0, 0)),
                ],
                out_specs=pl.BlockSpec((tm, n_pad), lambda i: (i, 0)),
            ),
            compiler_params=pltpu.CompilerParams(
                dimension_semantics=("parallel",),
                vmem_limit_bytes=vmem_limit,
            ),
            cost_estimate=cost,
        )(x2d, w_t)
    else:
        # -------- N/K-tiled fallback (large weights): f32 accumulator in VMEM.
        n_base = n_pad
        grid_n = _cdiv(n_base, max(128, _round_up(tn_target, 128)))
        tn = _round_up(_cdiv(n_base, grid_n), 128)
        n_pad2 = tn * grid_n

        k_base = _round_up(dim_input, 128)
        grid_k = _cdiv(k_base, max(128, _round_up(tk_target, 128)))
        tk = _round_up(_cdiv(k_base, grid_k), 128)
        k_pad2 = tk * grid_k

        if k_pad2 != dim_input:
            x2d = jnp.pad(x2d, ((0, 0), (0, k_pad2 - dim_input)))
        if (k_pad2, n_pad2) != (dim_input, dim_attn):
            w_t = jnp.pad(w_t, ((0, k_pad2 - dim_input), (0, n_pad2 - dim_attn)))

        per_row = 2 * (tk + tn) * itemsize + tn * 4    # x/out rows (dbl-buf) + acc row
        w_block_bytes = 2 * tk * tn * itemsize
        tm_cap = max(align,
                     ((vmem_budget - w_block_bytes) // per_row) // align * align)
        tm_eff_max = min(tm_max, tm_cap)
        n_tiles_m = _cdiv(m, max(align, tm_eff_max))
        if want_two_m_tiles and m > align:
            n_tiles_m = max(n_tiles_m, 2)
        tm = min(_round_up(_cdiv(m, n_tiles_m), align),
                 _round_up(tm_eff_max, align))
        tm = max(align, tm)
        grid_m = _cdiv(m, tm)

        vmem_needed = w_block_bytes + tm * per_row
        vmem_limit = int(min(max(vmem_needed * 3 // 2, 16 * 1024 * 1024), vmem_cap))

        out2d = pl.pallas_call(
            _query_dot_acc_kernel,
            out_shape=jax.ShapeDtypeStruct((m, n_pad2), dtype),
            grid_spec=pltpu.PrefetchScalarGridSpec(
                num_scalar_prefetch=0,
                grid=(grid_m, grid_n, grid_k),
                in_specs=[
                    pl.BlockSpec((tm, tk), lambda i, j, k: (i, k)),
                    pl.BlockSpec((tk, tn), lambda i, j, k: (k, j)),
                ],
                out_specs=pl.BlockSpec((tm, tn), lambda i, j, k: (i, j)),
                scratch_shapes=[pltpu.VMEM((tm, tn), jnp.float32)],
            ),
            compiler_params=pltpu.CompilerParams(
                dimension_semantics=("parallel", "parallel", "arbitrary"),
                vmem_limit_bytes=vmem_limit,
            ),
            cost_estimate=cost,
        )(x2d, w_t)

    if out2d.shape[1] != dim_attn:
        out2d = out2d[:, :dim_attn]
    return out2d.reshape(*lead_shape, dim_attn)


# --------------------------------------------------------------------------- #
# Demo / self-check
# --------------------------------------------------------------------------- #
if __name__ == "__main__":
    # Small shapes consistent with the module's forward.
    batch, seq = 2, 8
    dim_input, dim_attn = 32, 32

    key = jax.random.PRNGKey(0)
    kx, kw = jax.random.split(key)

    x = jax.random.normal(kx, (batch, seq, dim_input), dtype=jnp.float32)
    bound = 1.0 / (dim_input ** 0.5)
    weight = jax.random.uniform(
        kw, (dim_attn, dim_input), minval=-bound, maxval=bound, dtype=jnp.float32
    )

    fwd = jax.jit(query_forward)
    out = jax.block_until_ready(fwd(x, weight))
    ref = jnp.einsum("bsk,nk->bsn", x, weight)
    assert out.shape == (batch, seq, dim_attn)
    assert jnp.allclose(out, ref, atol=1e-5, rtol=1e-5)

    # Also exercise the N/K-tiled accumulator fallback (used for large weights),
    # still at small shapes: grid = (M, 3, 2).
    d_in2, d_attn2 = 256, 384
    kx2, kw2 = jax.random.split(kw)
    x2 = jax.random.normal(kx2, (batch, seq, d_in2), dtype=jnp.float32)
    b2 = 1.0 / (d_in2 ** 0.5)
    w2 = jax.random.uniform(
        kw2, (d_attn2, d_in2), minval=-b2, maxval=b2, dtype=jnp.float32
    )
    fwd_tiled = jax.jit(functools.partial(
        query_forward, force_tiled=True, tn_target=128, tk_target=128))
    out2 = jax.block_until_ready(fwd_tiled(x2, w2))
    ref2 = jnp.einsum("bsk,nk->bsn", x2, w2)
    assert out2.shape == (batch, seq, d_attn2)
    assert jnp.allclose(out2, ref2, atol=1e-4, rtol=1e-4)

    print("KERNEL_OK")
</pallas_src>

<mosaic_0001>
module attributes {stable_mosaic.version = 11 : i64} {
  func.func @_query_dot_kernel(%arg0: i32, %arg1: memref<8x32xf32, #tpu.memory_space<vmem>>, %arg2: memref<32x128xf32, #tpu.memory_space<vmem>>, %arg3: memref<8x128xf32, #tpu.memory_space<vmem>>) attributes {dimension_semantics = [#tpu.dimension_semantics<parallel>], iteration_bounds = array<i64: 2>, scalar_prefetch = 0 : i64, scratch_operands = 0 : i64, tpu.core_type = #tpu.core_type<tc>, window_params = [{transform_indices = @transform_0, window_bounds = array<i64: 8, 32>}, {pipeline_mode = #tpu.pipeline_mode<synchronous>, transform_indices = @transform_1, window_bounds = array<i64: 32, 128>}, {transform_indices = @transform_2, window_bounds = array<i64: 8, 128>}]} {
    %c0 = arith.constant 0 : index
    %c0_0 = arith.constant 0 : index
    %0 = vector.load %arg1[%c0, %c0_0] : memref<8x32xf32, #tpu.memory_space<vmem>>, vector<8x32xf32>
    %c0_1 = arith.constant 0 : index
    %c0_2 = arith.constant 0 : index
    %1 = vector.load %arg2[%c0_1, %c0_2] : memref<32x128xf32, #tpu.memory_space<vmem>>, vector<32x128xf32>
    %cst = arith.constant dense<0.000000e+00> : vector<8x128xf32>
    %2 = tpu.matmul %0, %1, %cst {dimension_numbers = #tpu.dot_dimension_numbers<[1], [0], [0], [1], [0, 0, 1, 1], [], []>} : vector<8x32xf32>, vector<32x128xf32>, vector<8x128xf32> -> vector<8x128xf32>
    %c0_3 = arith.constant 0 : index
    %c0_4 = arith.constant 0 : index
    %3 = vector.load %arg3[%c0_3, %c0_4] : memref<8x128xf32, #tpu.memory_space<vmem>>, vector<8x128xf32>
    tpu.vector_store %arg3[%c0_3, %c0_4], %2 {strides = array<i32>} : memref<8x128xf32, #tpu.memory_space<vmem>>, vector<8x128xf32>,
    return
  }
  func.func @transform_0(%arg0: i32) -> (i32, i32) {
    %c0_i32 = arith.constant 0 : i32
    %c0_i32_0 = arith.constant 0 : i32
    return %arg0, %c0_i32 : i32, i32
  }
  func.func @transform_1(%arg0: i32) -> (i32, i32) {
    %c0_i32 = arith.constant 0 : i32
    %c0_i32_0 = arith.constant 0 : i32
    %c0_i32_1 = arith.constant 0 : i32
    return %c0_i32, %c0_i32_0 : i32, i32
  }
  func.func @transform_2(%arg0: i32) -> (i32, i32) {
    %c0_i32 = arith.constant 0 : i32
    %c0_i32_0 = arith.constant 0 : i32
    return %arg0, %c0_i32 : i32, i32
  }
}

</mosaic_0001>

<llo_original>
// kernel: query_forward.1
$region0: #{query_forward.1}
  #allocation0 [shape = 'u32[]', space=smem, size = 0x4, offset = 0x4, fixed_abs, tag = 'smem constant byte address 0x4 - core index']
  #allocation1 [shape = 'u32[144,128]{1,0:T(1,128)}', space=vmem, size = 0x12000, scoped, tag = 'internal scratch']
  %s0 = inlined_call_operand.vmem [shape: f32[16,32], index: 0, kind: input, shape index: {}]
  %s1 = inlined_call_operand.vmem [shape: f32[32,128], index: 1, kind: input, shape index: {}]
  %s2 = inlined_call_operand.vmem [shape: f32[16,128], index: 2, kind: output, shape index: {}]
  %s3 = sld [smem:[#allocation0]]
  $region41: #{query_forward.1} parent=0
    _
  %s5 = ssub.s32 1, %s3
  %s6 = scalar_select 0, %s5, %s3
  loop: start=0, step=1, limit=4
  $region2: #{query_forward.1} parent=0 // loop_pre_header
    _
  $region3: #{query_forward.1} parent=0 // loop_header
    %s8 = sphi 0, %s12
    %p9 = scmp.ge.s32.totalorder %s8, 4
    %s18 = sphi 0, %s20
    %s21 = sphi 0, %s18
    %s22 = sphi 0, %s21
    %s38 = sphi 0, %s22
    %s42 = sphi 0, %s42
    %s44 = sphi 0, %s42
    %s45 = sphi 0, %s44
    %s59 = sphi 0, %s45
    %s65 = sphi 0, %s67
    %s68 = sphi 0, %s65
    %s69 = sphi 0, %s68
    %s85 = sphi 0, %s69
  $region4: #{query_forward.1} parent=0 // loop_header_branch
    %11 = sbr.rel (%p9) target = $region8
  $region5: #{query_forward.1} parent=0 // loop_body
    %s13 = ssub.s32 %s8, 1
    %s14 = ssub.s32 %s8, 2
    %s15 = sadd.s32 %s8, 1
    %s16 = ssub.s32 %s8, %s15
    %p17 = scmp.eq.s32.totalorder %s16, 0
    %s19 = sadd.s32 %s18, 1
    %s20 = scalar_select %p17, %s18, %s19
    %p23 = pneg %p17
    %p24 = scmp.eq.s32.totalorder %s8, 1
    %p25 = por %p23, %p24
    %p26 = scmp.ne.s32.totalorder %s18, %s21
    %p27 = scmp.eq.s32.totalorder %s8, 0
    %p28 = por %p26, %p27
    %p29 = scmp.ne.s32.totalorder %s18, %s21
    %p30 = scmp.eq.s32.totalorder %s13, 1
    %p31 = por %p29, %p30
    %p32 = scmp.ne.s32.totalorder %s21, %s22
    %p33 = scmp.eq.s32.totalorder %s13, 0
    %p34 = por %p32, %p33
    %p35 = scmp.ne.s32.totalorder %s21, %s22
    %p36 = scmp.eq.s32.totalorder %s14, 1
    %p37 = por %p35, %p36
    %p39 = scmp.ne.s32.totalorder %s22, %s38
    %p40 = scmp.eq.s32.totalorder %s14, 0
    %p41 = por %p39, %p40
    %s43 = sadd.s32 %s42, 1
    %p46 = scmp.eq.s32.totalorder %s8, 1
    %p47 = scmp.ne.s32.totalorder %s42, %s44
    %p48 = scmp.eq.s32.totalorder %s8, 0
    %p49 = por %p47, %p48
    %p50 = scmp.ne.s32.totalorder %s42, %s44
    %p51 = scmp.eq.s32.totalorder %s13, 1
    %p52 = por %p50, %p51
    %p53 = scmp.ne.s32.totalorder %s44, %s45
    %p54 = scmp.eq.s32.totalorder %s13, 0
    %p55 = por %p53, %p54
    %p56 = scmp.ne.s32.totalorder %s44, %s45
    %p57 = scmp.eq.s32.totalorder %s14, 1
    %p58 = por %p56, %p57
    %p60 = scmp.ne.s32.totalorder %s45, %s59
    %p61 = scmp.eq.s32.totalorder %s14, 0
    %p62 = por %p60, %p61
    %s63 = ssub.s32 %s8, %s15
    %p64 = scmp.eq.s32.totalorder %s63, 0
    %s66 = sadd.s32 %s65, 1
    %s67 = scalar_select %p64, %s65, %s66
    %p70 = pneg %p64
    %p71 = scmp.eq.s32.totalorder %s8, 1
    %p72 = por %p70, %p71
    %p73 = scmp.ne.s32.totalorder %s65, %s68
    %p74 = scmp.eq.s32.totalorder %s8, 0
    %p75 = por %p73, %p74
    %p76 = scmp.ne.s32.totalorder %s65, %s68
    %p77 = scmp.eq.s32.totalorder %s13, 1
    %p78 = por %p76, %p77
    %p79 = scmp.ne.s32.totalorder %s68, %s69
    %p80 = scmp.eq.s32.totalorder %s13, 0
    %p81 = por %p79, %p80
    %p82 = scmp.ne.s32.totalorder %s68, %s69
    %p83 = scmp.eq.s32.totalorder %s14, 1
    %p84 = por %p82, %p83
    %p86 = scmp.ne.s32.totalorder %s69, %s85
    %p87 = scmp.eq.s32.totalorder %s14, 0
    %p88 = por %p86, %p87
    %p89 = scmp.le.s32.totalorder 1, %s8
    %p90 = scmp.lt.s32.totalorder %s8, 3
    %p91 = pnand %p89, %p90
    %p92 = pneg %p91
    // Predicated region
    $region9: #{query_forward.1} parent=5 // pred_check
      _
    $region10: #{query_forward.1} parent=5 // pred_check_branch
      %94 = sbr.rel (%p91) target = $region12
    $region11: #{query_forward.1} parent=5 // pred_region
      %s95 = ssub.s32 %s8, 1
      // Predicated region
      $region13: #{query_forward.1} parent=11 // pred_check
        %p96 = pneg %p55
      $region14: #{query_forward.1} parent=11 // pred_check_branch
        %98 = sbr.rel (%p96) target = $region16
      $region15: #{query_forward.1} parent=11 // pred_region
        _
      $region16: #{query_forward.1} parent=11 // pred_fallthru
        _
    $region12: #{query_forward.1} parent=5 // pred_fallthru
      _
    %p99 = scmp.lt.s32.totalorder %s8, 2
    // Predicated region
    $region17: #{query_forward.1} parent=5 // pred_check
      %p100 = pneg %p99
    $region18: #{query_forward.1} parent=5 // pred_check_branch
      %102 = sbr.rel (%p100) target = $region20
    $region19: #{query_forward.1} parent=5 // pred_region
      // Predicated region
      $region21: #{query_forward.1} parent=19 // pred_check
        %p103 = pneg %p28
      $region22: #{query_forward.1} parent=19 // pred_check_branch
        %105 = sbr.rel (%p103) target = $region24
      $region23: #{query_forward.1} parent=19 // pred_region
        %p106 = scmp.lt.s32.totalorder %s8, 1
        %s107 = scalar_select %p106, %s8, 1
        %s108 = smul.addr %s107, 8
        %s109 = scalar_lea.vmem %s0, %s108
      $region24: #{query_forward.1} parent=19 // pred_fallthru
        _
    $region20: #{query_forward.1} parent=5 // pred_fallthru
      _
    %p110 = scmp.le.s32.totalorder 1, %s8
    %p111 = scmp.lt.s32.totalorder %s8, 3
    %p112 = pnand %p110, %p111
    %p113 = pneg %p112
    // Predicated region
    $region25: #{query_forward.1} parent=5 // pred_check
      _
    $region26: #{query_forward.1} parent=5 // pred_check_branch
      %115 = sbr.rel (%p112) target = $region28
    $region27: #{query_forward.1} parent=5 // pred_region
      %s116 = ssub.s32 %s8, 1
      %p117 = scmp.lt.s32.totalorder %s13, 1
      %s118 = scalar_select %p117, %s13, 1
      %s119 = smul.addr %s118, 8
      %s120 = scalar_lea.vmem %s0, %s119
      %p121 = pneg %p34
      %p122 = pneg %p31
      %p123 = pneg %p55
      %p124 = pneg %p52
      %p125 = pneg %p81
      %p126 = pneg %p78
      %p127 = scmp.lt.s32.totalorder %s13, 1
      %s128 = scalar_select %p127, %s13, 1
      %s129 = smul.addr %s128, 8
      %s130 = scalar_lea.vmem %s2, %s129
      %p131 = scmp.lt.s32.totalorder %s13, 1
      %s132 = scalar_select %p131, %s13, 1
      %s133 = smul.addr %s132, 8
      %s134 = scalar_lea.vmem %s0, %s133
      %p135 = scmp.lt.s32.totalorder %s13, 1
      %s136 = scalar_select %p135, %s13, 1
      %s137 = smul.addr %s136, 8
      %s138 = scalar_lea.vmem %s2, %s137
      %v139 = vld [vmem:[%s134] sm:$0xff]
      %v140 = vld [vmem:[%s1] sm:$0xff]
      %v141 = vld [vmem:[%s1 + $0x8] sm:$0xff]
      %v142 = vld [vmem:[%s1 + $0x10] sm:$0xff]
      %v143 = vld [vmem:[%s1 + $0x18] sm:$0xff]
      %vm144 = vcmask 261120
      %v146 = vsel %vm144, %v139, 0
      %148 = vmatprep.subr.mxu0 0.0
      %149 = vmatpush1.msra.mxu0 %v140
      %150 = vmatprep.subr.mxu0 0.0
      %151 = vmatpush1.msra.mxu0 %v141
      %152 = vmatprep.subr.mxu0 0.0
      %153 = vmatpush1.msra.mxu0 %v142
      %154 = vmatprep.subr.mxu0 0.0
      %155 = vmatpush1.msra.mxu0 %v143
      %156 = vmatprep.subr.mxu0 0.0
      %157 = vmatpush1.msra.mxu0 0.0
      %158 = vmatprep.subr.mxu0 0.0
      %159 = vmatpush1.msra.mxu0 0.0
      %160 = vmatprep.subr.mxu0 0.0
      %161 = vmatpush1.msra.mxu0 0.0
      %162 = vmatprep.subr.mxu0 0.0
      %163 = vmatpush1.msra.mxu0 0.0
      %164 = vmatprep.subr.mxu0 0.0
      %165 = vmatpush1.msra.mxu0 0.0
      %166 = vmatprep.subr.mxu0 0.0
      %167 = vmatpush1.msra.mxu0 0.0
      %168 = vmatprep.subr.mxu0 0.0
      %169 = vmatpush1.msra.mxu0 0.0
      %170 = vmatprep.subr.mxu0 0.0
      %171 = vmatpush1.msra.mxu0 0.0
      %172 = vmatprep.subr.mxu0 0.0
      %173 = vmatpush1.msra.mxu0 0.0
      %174 = vmatprep.subr.mxu0 0.0
      %175 = vmatpush1.msra.mxu0 0.0
      %176 = vmatprep.subr.mxu0 0.0
      %177 = vmatpush1.msra.mxu0 0.0
      %178 = vmatprep.subr.mxu0 0.0
      %179 = vmatpush1.msra.mxu0 0.0
      %180 = vmatprep.subr.mxu0 0.0
      %181 = vmatpush1.msra.mxu0 0.0
      %182 = vmatprep.subr.mxu0 0.0
      %183 = vmatpush1.msra.mxu0 0.0
      %184 = vmatprep.subr.mxu0 0.0
      %185 = vmatpush1.msra.mxu0 0.0
      %186 = vmatprep.subr.mxu0 0.0
      %187 = vmatpush1.msra.mxu0 0.0
      %188 = vmatprep.subr.mxu0 0.0
      %189 = vmatpush1.msra.mxu0 0.0
      %190 = vmatprep.subr.mxu0 0.0
      %191 = vmatpush1.msra.mxu0 0.0
      %192 = vmatprep.subr.mxu0 0.0
      %193 = vmatpush1.msra.mxu0 0.0
      %194 = vmatprep.subr.mxu0 0.0
      %195 = vmatpush1.msra.mxu0 0.0
      %196 = vmatprep.subr.mxu0 0.0
      %197 = vmatpush1.msra.mxu0 0.0
      %198 = vmatprep.subr.mxu0 0.0
      %199 = vmatpush1.msra.mxu0 0.0
      %200 = vmatprep.subr.mxu0 0.0
      %201 = vmatpush1.msra.mxu0 0.0
      %202 = vmatprep.subr.mxu0 0.0
      %203 = vmatpush1.msra.mxu0 0.0
      %204 = vmatprep.subr.mxu0 0.0
      %205 = vmatpush1.msra.mxu0 0.0
      %206 = vmatprep.subr.mxu0 0.0
      %207 = vmatpush1.msra.mxu0 0.0
      %208 = vmatprep.subr.mxu0 0.0
      %209 = vmatpush1.msra.mxu0 0.0
      %210 = vmatprep.subr.mxu0 0.0
      %211 = vmatpush1.msra.mxu0 0.0
      %212 = vmatprep.mubr.f32.mxu0 0.0
      %213 = vmatmul.mubr.f32.gmra.mrb[0].mxu0 %v146
      %v214 = vpop.f32.mrb[0].mxu0
      %v215 = vadd.f32 0.0, %v214
      %v216 = vpop.f32.mrb[0].mxu0
      %217 = vdwg.mxu0
      %218 = vst [vmem:[%s138] sm:$0xff] %v215
      %p219 = scmp.lt.s32.totalorder %s13, 1
      %s220 = scalar_select %p219, %s13, 1
      %s221 = smul.addr %s220, 8
      %s222 = scalar_lea.vmem %s2, %s221
      // Predicated region
      $region29: #{query_forward.1} parent=27 // pred_check
        %p223 = pneg %p78
      $region30: #{query_forward.1} parent=27 // pred_check_branch
        %225 = sbr.rel (%p223) target = $region32
      $region31: #{query_forward.1} parent=27 // pred_region
        _
      $region32: #{query_forward.1} parent=27 // pred_fallthru
        _
    $region28: #{query_forward.1} parent=5 // pred_fallthru
      _
    %p226 = scmp.le.s32.totalorder 2, %s8
    // Predicated region
    $region33: #{query_forward.1} parent=5 // pred_check
      %p227 = pneg %p226
    $region34: #{query_forward.1} parent=5 // pred_check_branch
      %229 = sbr.rel (%p227) target = $region36
    $region35: #{query_forward.1} parent=5 // pred_region
      %s230 = ssub.s32 %s8, 2
      // Predicated region
      $region37: #{query_forward.1} parent=35 // pred_check
        %p231 = pneg %p84
      $region38: #{query_forward.1} parent=35 // pred_check_branch
        %233 = sbr.rel (%p231) target = $region40
      $region39: #{query_forward.1} parent=35 // pred_region
        %p234 = scmp.lt.s32.totalorder %s14, 1
        %s235 = scalar_select %p234, %s14, 1
        %s236 = smul.addr %s235, 8
        %s237 = scalar_lea.vmem %s2, %s236
      $region40: #{query_forward.1} parent=35 // pred_fallthru
        _
    $region36: #{query_forward.1} parent=5 // pred_fallthru
      _
  $region6: #{query_forward.1} parent=0 // loop_footer
    %s12 = sadd.s32 1, %s8
  $region7: #{query_forward.1} parent=0 // loop_footer_branch
    %7 = sbr.rel target = $region3
  $region8: #{query_forward.1} parent=0 // loop_exit
    _

</llo_original>
